<compile_context>
chip_gen: v6e
topology: v6e:2x2x1
jax: 0.10.0
libtpu: 0.0.40
codegen_flags: <defaults>
</compile_context>

<pallas_src>
import math

import jax
import jax.numpy as jnp
from jax import lax
from jax.experimental import pallas as pl
from jax.experimental.pallas import tpu as pltpu

LANE = 128
_NEG_BIG = -1e30  # bias for padded logit lanes -> exp underflows to exactly 0


def _round_up(x, m):
    return (x + m - 1) // m * m


def _cdiv(a, b):
    return -(-a // b)


def _choose_tile_b(B, tile_b):
    """Batch tile: multiple of 8, minimal padding, >=2 grid steps when large."""
    b8 = _round_up(B, 8)
    # v7x megacore only helps with >=2 grid steps; floor the split at ~256 rows.
    cap = b8 if b8 < 512 else max(256, _round_up(_cdiv(b8, 2), 8))
    t = min(tile_b, cap)
    n_tiles = _cdiv(B, t)
    return _round_up(_cdiv(B, n_tiles), 8)


def _actor_kernel(seed_ref,
                  state_ref, w1_ref, b1_ref, w2_ref, b2_ref, w3_ref, b3_ref,
                  logp_ref, act_ref):
    # --- MLP: Linear -> Tanh -> Linear -> Tanh -> Linear (Identity) ---
    x = state_ref[...]                                                   # (TB, S)
    h1 = jnp.tanh(jnp.dot(x, w1_ref[...],
                          preferred_element_type=jnp.float32) + b1_ref[...])
    h2 = jnp.tanh(jnp.dot(h1, w2_ref[...],
                          preferred_element_type=jnp.float32) + b2_ref[...])
    logits = jnp.dot(h2, w3_ref[...],
                     preferred_element_type=jnp.float32) + b3_ref[...]   # (TB, Ap)

    # --- probs.log() == log_softmax(logits); one max + one sum reduction ---
    m = jnp.max(logits, axis=-1, keepdims=True)
    e = jnp.exp(logits - m)                       # reused by the sampler below
    denom = jnp.sum(e, axis=-1, keepdims=True)
    logp_ref[...] = (logits - m) - jnp.log(denom)

    # --- Categorical(probs).sample() via exponential race: argmax e_a / E_a ---
    # Counter-based hash PRNG (integer VPU ops only; no TPU-only primitives).
    shape = logits.shape
    seed = seed_ref[0].astype(jnp.uint32)
    tile = pl.program_id(0).astype(jnp.uint32)
    base = seed * jnp.uint32(0x9E3779B1) + tile * jnp.uint32(0x85EBCA77)
    rows = lax.broadcasted_iota(jnp.int32, shape, 0).astype(jnp.uint32)
    cols = lax.broadcasted_iota(jnp.int32, shape, 1).astype(jnp.uint32)
    bits = base + rows * jnp.uint32(0x27D4EB2F) + cols * jnp.uint32(0x165667B1)
    bits = bits ^ (bits >> 16)                    # murmur3-style finalizer
    bits = bits * jnp.uint32(0x7FEB352D)
    bits = bits ^ (bits >> 15)
    bits = bits * jnp.uint32(0x846CA68B)
    bits = bits ^ (bits >> 16)
    # 23 random mantissa bits -> f32 in [1, 2) -> uniform u in [0, 1)
    fbits = (bits >> 9) | jnp.uint32(0x3F800000)
    u = lax.bitcast_convert_type(fbits, jnp.float32) - 1.0
    exp1 = -jnp.log(u)                            # Exp(1) sample; +inf if u == 0
    r = e / exp1                                  # padded lanes: e == 0 -> r == 0

    rmax = jnp.max(r, axis=-1, keepdims=True)
    lane = lax.broadcasted_iota(jnp.int32, shape, 1).astype(jnp.float32)
    idx = jnp.min(jnp.where(r >= rmax, lane, jnp.float32(shape[-1])),
                  axis=-1, keepdims=True)
    # Compact (TILE_B, 1) int32 store: 128x less HBM writeback than broadcasting.
    act_ref[...] = idx.astype(jnp.int32)


def categorical_actor_forward(state, padded_params, seed, action_dim, *, tile_b=1024):
    """Returns (action, log_probs) matching CategoricalActor.forward(state)."""
    B, S = state.shape
    Hp = padded_params["w1"].shape[1]
    Ap = padded_params["w3"].shape[1]

    TILE_B = _choose_tile_b(B, tile_b)
    Bp = _round_up(B, TILE_B)
    if Bp != B:
        state = jnp.pad(state, ((0, Bp - B), (0, 0)))
    grid = (Bp // TILE_B,)

    seed_arr = jnp.asarray([seed], dtype=jnp.int32)

    batched = lambda i, s: (i, 0)     # state / outputs march over batch tiles
    resident = lambda i, s: (0, 0)    # weights & biases stay resident in VMEM

    logp_pad, act_pad = pl.pallas_call(
        _actor_kernel,
        out_shape=(jax.ShapeDtypeStruct((Bp, Ap), jnp.float32),
                   jax.ShapeDtypeStruct((Bp, 1), jnp.int32)),
        grid_spec=pltpu.PrefetchScalarGridSpec(
            num_scalar_prefetch=1,
            grid=grid,
            in_specs=[
                pl.BlockSpec((TILE_B, S), batched),   # state
                pl.BlockSpec((S, Hp), resident),      # w1
                pl.BlockSpec((1, Hp), resident),      # b1
                pl.BlockSpec((Hp, Hp), resident),     # w2
                pl.BlockSpec((1, Hp), resident),      # b2
                pl.BlockSpec((Hp, Ap), resident),     # w3
                pl.BlockSpec((1, Ap), resident),      # b3
            ],
            out_specs=(
                pl.BlockSpec((TILE_B, Ap), batched),  # log-probs (lane-dense f32)
                pl.BlockSpec((TILE_B, 1), batched),   # action index (compact)
            ),
        ),
        compiler_params=pltpu.CompilerParams(
            dimension_semantics=("parallel",)),       # v7x: shard tiles over 2 TCs
    )(seed_arr, state,
      padded_params["w1"], padded_params["b1"],
      padded_params["w2"], padded_params["b2"],
      padded_params["w3"], padded_params["b3"])

    action = act_pad[:B, 0]                 # (B,) int32
    logp = logp_pad[:B, :action_dim]        # (B, action_dim); padded lanes dropped
    return action, logp


def init_params(key, state_dim, hidden_sizes, action_dim):
    """PyTorch nn.Linear default init, weights stored as (in, out) = W_pt.T."""
    sizes = [state_dim, *hidden_sizes, action_dim]
    params = {}
    for j in range(len(sizes) - 1):
        key, kw, kb = jax.random.split(key, 3)
        scale = 1.0 / math.sqrt(sizes[j])
        params[f"w{j + 1}"] = jax.random.uniform(
            kw, (sizes[j], sizes[j + 1]), jnp.float32, -scale, scale)
        params[f"b{j + 1}"] = jax.random.uniform(
            kb, (1, sizes[j + 1]), jnp.float32, -scale, scale)
    return params


def pad_params(params, state_dim, hidden_sizes, action_dim):
    """Pad hidden/action feature dims up to multiples of 128 lanes.

    Math-preserving: zero weight cols + zero bias -> tanh(0)=0 hidden units whose
    outgoing (zero) rows contribute nothing; padded logit lanes get a huge
    negative bias so their softmax mass is exactly 0.
    """
    sizes = [state_dim, *hidden_sizes, action_dim]
    psizes = [state_dim] + [_round_up(s, LANE) for s in sizes[1:]]
    n = len(sizes) - 1
    padded = {}
    for j in range(n):
        w = params[f"w{j + 1}"]
        b = params[f"b{j + 1}"]
        in_pad = psizes[j] - w.shape[0]
        out_pad = psizes[j + 1] - w.shape[1]
        padded[f"w{j + 1}"] = jnp.pad(w, ((0, in_pad), (0, out_pad)))
        fill = _NEG_BIG if j == n - 1 else 0.0
        padded[f"b{j + 1}"] = jnp.pad(b, ((0, 0), (0, out_pad)),
                                      constant_values=fill)
    return padded


def _reference_logprobs(state, params):
    h1 = jnp.tanh(state @ params["w1"] + params["b1"])
    h2 = jnp.tanh(h1 @ params["w2"] + params["b2"])
    logits = h2 @ params["w3"] + params["b3"]
    return jnp.log(jax.nn.softmax(logits, axis=-1))


if __name__ == "__main__":
    B, STATE_DIM, ACTION_DIM = 8, 16, 8
    HIDDEN = (64, 64)

    key = jax.random.PRNGKey(0)
    key, k_state, k_params = jax.random.split(key, 3)

    state = jax.random.normal(k_state, (B, STATE_DIM), jnp.float32)
    params = init_params(k_params, STATE_DIM, HIDDEN, ACTION_DIM)
    padded = pad_params(params, STATE_DIM, HIDDEN, ACTION_DIM)

    action, logp = categorical_actor_forward(state, padded, seed=0,
                                             action_dim=ACTION_DIM)
    jax.block_until_ready((action, logp))

    ref_logp = _reference_logprobs(state, params)

    assert action.shape == (B,) and action.dtype == jnp.int32
    assert logp.shape == (B, ACTION_DIM)
    assert bool(jnp.all((action >= 0) & (action < ACTION_DIM)))
    assert jnp.allclose(logp, ref_logp, atol=1e-5)

    print("KERNEL_OK")
</pallas_src>

<mosaic_0001>
module attributes {stable_mosaic.version = 11 : i64} {
  func.func @_actor_kernel(%arg0: i32, %arg1: memref<1xi32, #tpu.memory_space<smem>>, %arg2: memref<8x16xf32, #tpu.memory_space<vmem>>, %arg3: memref<16x128xf32, #tpu.memory_space<vmem>>, %arg4: memref<1x128xf32, #tpu.memory_space<vmem>>, %arg5: memref<128x128xf32, #tpu.memory_space<vmem>>, %arg6: memref<1x128xf32, #tpu.memory_space<vmem>>, %arg7: memref<128x128xf32, #tpu.memory_space<vmem>>, %arg8: memref<1x128xf32, #tpu.memory_space<vmem>>, %arg9: memref<8x128xf32, #tpu.memory_space<vmem>>, %arg10: memref<8x1xi32, #tpu.memory_space<vmem>>) attributes {dimension_semantics = [#tpu.dimension_semantics<parallel>], iteration_bounds = array<i64: 1>, scalar_prefetch = 1 : i64, scratch_operands = 0 : i64, tpu.core_type = #tpu.core_type<tc>, window_params = [{transform_indices = @transform_0, window_bounds = array<i64: 8, 16>}, {pipeline_mode = #tpu.pipeline_mode<synchronous>, transform_indices = @transform_1, window_bounds = array<i64: 16, 128>}, {pipeline_mode = #tpu.pipeline_mode<synchronous>, transform_indices = @transform_2, window_bounds = array<i64: 1, 128>}, {pipeline_mode = #tpu.pipeline_mode<synchronous>, transform_indices = @transform_3, window_bounds = array<i64: 128, 128>}, {pipeline_mode = #tpu.pipeline_mode<synchronous>, transform_indices = @transform_4, window_bounds = array<i64: 1, 128>}, {pipeline_mode = #tpu.pipeline_mode<synchronous>, transform_indices = @transform_5, window_bounds = array<i64: 128, 128>}, {pipeline_mode = #tpu.pipeline_mode<synchronous>, transform_indices = @transform_6, window_bounds = array<i64: 1, 128>}, {transform_indices = @transform_7, window_bounds = array<i64: 8, 128>}, {transform_indices = @transform_8, window_bounds = array<i64: 8, 1>}]} {
    %c0 = arith.constant 0 : index
    %c0_0 = arith.constant 0 : index
    %0 = vector.load %arg2[%c0, %c0_0] : memref<8x16xf32, #tpu.memory_space<vmem>>, vector<8x16xf32>
    %c0_1 = arith.constant 0 : index
    %c0_2 = arith.constant 0 : index
    %1 = vector.load %arg3[%c0_1, %c0_2] : memref<16x128xf32, #tpu.memory_space<vmem>>, vector<16x128xf32>
    %cst = arith.constant dense<0.000000e+00> : vector<8x128xf32>
    %2 = tpu.matmul %0, %1, %cst {dimension_numbers = #tpu.dot_dimension_numbers<[1], [0], [0], [1], [0, 0, 1, 1], [], []>} : vector<8x16xf32>, vector<16x128xf32>, vector<8x128xf32> -> vector<8x128xf32>
    %c0_3 = arith.constant 0 : index
    %c0_4 = arith.constant 0 : index
    %3 = vector.load %arg4[%c0_3, %c0_4] : memref<1x128xf32, #tpu.memory_space<vmem>>, vector<1x128xf32>
    %4 = vector.broadcast %3 : vector<1x128xf32> to vector<8x128xf32>
    %5 = arith.addf %2, %4 : vector<8x128xf32>
    %6 = math.tanh %5 : vector<8x128xf32>
    %c0_5 = arith.constant 0 : index
    %c0_6 = arith.constant 0 : index
    %7 = vector.load %arg5[%c0_5, %c0_6] : memref<128x128xf32, #tpu.memory_space<vmem>>, vector<128x128xf32>
    %cst_7 = arith.constant dense<0.000000e+00> : vector<8x128xf32>
    %8 = tpu.matmul %6, %7, %cst_7 {dimension_numbers = #tpu.dot_dimension_numbers<[1], [0], [0], [1], [0, 0, 1, 1], [], []>} : vector<8x128xf32>, vector<128x128xf32>, vector<8x128xf32> -> vector<8x128xf32>
    %c0_8 = arith.constant 0 : index
    %c0_9 = arith.constant 0 : index
    %9 = vector.load %arg6[%c0_8, %c0_9] : memref<1x128xf32, #tpu.memory_space<vmem>>, vector<1x128xf32>
    %10 = vector.broadcast %9 : vector<1x128xf32> to vector<8x128xf32>
    %11 = arith.addf %8, %10 : vector<8x128xf32>
    %12 = math.tanh %11 : vector<8x128xf32>
    %c0_10 = arith.constant 0 : index
    %c0_11 = arith.constant 0 : index
    %13 = vector.load %arg7[%c0_10, %c0_11] : memref<128x128xf32, #tpu.memory_space<vmem>>, vector<128x128xf32>
    %cst_12 = arith.constant dense<0.000000e+00> : vector<8x128xf32>
    %14 = tpu.matmul %12, %13, %cst_12 {dimension_numbers = #tpu.dot_dimension_numbers<[1], [0], [0], [1], [0, 0, 1, 1], [], []>} : vector<8x128xf32>, vector<128x128xf32>, vector<8x128xf32> -> vector<8x128xf32>
    %c0_13 = arith.constant 0 : index
    %c0_14 = arith.constant 0 : index
    %15 = vector.load %arg8[%c0_13, %c0_14] : memref<1x128xf32, #tpu.memory_space<vmem>>, vector<1x128xf32>
    %16 = vector.broadcast %15 : vector<1x128xf32> to vector<8x128xf32>
    %17 = arith.addf %14, %16 : vector<8x128xf32>
    %cst_15 = arith.constant dense<0xFF800000> : vector<8xf32>
    %18 = vector.multi_reduction <maximumf>, %17, %cst_15 [1] : vector<8x128xf32> to vector<8xf32>
    %19 = vector.shape_cast %18 : vector<8xf32> to vector<8x1xf32>
    %20 = vector.broadcast %19 : vector<8x1xf32> to vector<8x128xf32>
    %21 = arith.subf %17, %20 : vector<8x128xf32>
    %22 = math.exp %21 : vector<8x128xf32>
    %cst_16 = arith.constant dense<0.000000e+00> : vector<8xf32>
    %23 = vector.multi_reduction <add>, %22, %cst_16 [1] : vector<8x128xf32> to vector<8xf32>
    %24 = vector.shape_cast %23 : vector<8xf32> to vector<8x1xf32>
    %25 = vector.broadcast %19 : vector<8x1xf32> to vector<8x128xf32>
    %26 = arith.subf %17, %25 : vector<8x128xf32>
    %27 = math.log %24 : vector<8x1xf32>
    %28 = vector.broadcast %27 : vector<8x1xf32> to vector<8x128xf32>
    %29 = arith.subf %26, %28 : vector<8x128xf32>
    %c0_17 = arith.constant 0 : index
    %c0_18 = arith.constant 0 : index
    %30 = vector.load %arg9[%c0_17, %c0_18] : memref<8x128xf32, #tpu.memory_space<vmem>>, vector<8x128xf32>
    tpu.vector_store %arg9[%c0_17, %c0_18], %29 {strides = array<i32>} : memref<8x128xf32, #tpu.memory_space<vmem>>, vector<8x128xf32>,
    %c0_19 = arith.constant 0 : index
    %31 = memref.load %arg1[%c0_19] : memref<1xi32, #tpu.memory_space<smem>>
    %c-1640531535_i32 = arith.constant -1640531535 : i32
    %32 = arith.muli %31, %c-1640531535_i32 : i32
    %c-2048144777_i32 = arith.constant -2048144777 : i32
    %33 = arith.muli %arg0, %c-2048144777_i32 : i32
    %34 = arith.addi %32, %33 : i32
    %35 = tpu.iota {dimensions = array<i32: 0>} : vector<8x128xi32>
    %36 = tpu.iota {dimensions = array<i32: 1>} : vector<8x128xi32>
    %c668265263_i32 = arith.constant 668265263 : i32
    %37 = vector.broadcast %c668265263_i32 : i32 to vector<8x128xi32>
    %38 = arith.muli %35, %37 : vector<8x128xi32>
    %39 = vector.broadcast %34 : i32 to vector<8x128xi32>
    %40 = arith.addi %39, %38 : vector<8x128xi32>
    %c374761393_i32 = arith.constant 374761393 : i32
    %41 = vector.broadcast %c374761393_i32 : i32 to vector<8x128xi32>
    %42 = arith.muli %36, %41 : vector<8x128xi32>
    %43 = arith.addi %40, %42 : vector<8x128xi32>
    %c16_i32 = arith.constant 16 : i32
    %44 = vector.broadcast %c16_i32 : i32 to vector<8x128xi32>
    %45 = arith.shrui %43, %44 : vector<8x128xi32>
    %46 = arith.xori %43, %45 : vector<8x128xi32>
    %c2146121005_i32 = arith.constant 2146121005 : i32
    %47 = vector.broadcast %c2146121005_i32 : i32 to vector<8x128xi32>
    %48 = arith.muli %46, %47 : vector<8x128xi32>
    %c15_i32 = arith.constant 15 : i32
    %49 = vector.broadcast %c15_i32 : i32 to vector<8x128xi32>
    %50 = arith.shrui %48, %49 : vector<8x128xi32>
    %51 = arith.xori %48, %50 : vector<8x128xi32>
    %c-2073254261_i32 = arith.constant -2073254261 : i32
    %52 = vector.broadcast %c-2073254261_i32 : i32 to vector<8x128xi32>
    %53 = arith.muli %51, %52 : vector<8x128xi32>
    %c16_i32_20 = arith.constant 16 : i32
    %54 = vector.broadcast %c16_i32_20 : i32 to vector<8x128xi32>
    %55 = arith.shrui %53, %54 : vector<8x128xi32>
    %56 = arith.xori %53, %55 : vector<8x128xi32>
    %c9_i32 = arith.constant 9 : i32
    %57 = vector.broadcast %c9_i32 : i32 to vector<8x128xi32>
    %58 = arith.shrui %56, %57 : vector<8x128xi32>
    %c1065353216_i32 = arith.constant 1065353216 : i32
    %59 = vector.broadcast %c1065353216_i32 : i32 to vector<8x128xi32>
    %60 = arith.ori %58, %59 : vector<8x128xi32>
    %61 = tpu.bitcast %60 : vector<8x128xi32> -> vector<8x128xf32>
    %cst_21 = arith.constant 1.000000e+00 : f32
    %62 = vector.broadcast %cst_21 : f32 to vector<8x128xf32>
    %63 = arith.subf %61, %62 : vector<8x128xf32>
    %64 = math.log %63 : vector<8x128xf32>
    %cst_22 = arith.constant 0.000000e+00 : f32
    %65 = vector.broadcast %cst_22 : f32 to vector<8x128xf32>
    %66 = arith.subf %65, %64 : vector<8x128xf32>
    %67 = arith.divf %22, %66 : vector<8x128xf32>
    %cst_23 = arith.constant dense<0xFF800000> : vector<8xf32>
    %68 = vector.multi_reduction <maximumf>, %67, %cst_23 [1] : vector<8x128xf32> to vector<8xf32>
    %69 = vector.shape_cast %68 : vector<8xf32> to vector<8x1xf32>
    %70 = tpu.iota {dimensions = array<i32: 1>} : vector<8x128xi32>
    %71 = arith.sitofp %70 : vector<8x128xi32> to vector<8x128xf32>
    %72 = vector.broadcast %69 : vector<8x1xf32> to vector<8x128xf32>
    %73 = arith.cmpf oge, %67, %72 : vector<8x128xf32>
    %cst_24 = arith.constant 1.280000e+02 : f32
    %74 = vector.broadcast %cst_24 : f32 to vector<8x128xf32>
    %75 = arith.select %73, %71, %74 : vector<8x128xi1>, vector<8x128xf32>
    %cst_25 = arith.constant dense<0x7F800000> : vector<8xf32>
    %76 = vector.multi_reduction <minimumf>, %75, %cst_25 [1] : vector<8x128xf32> to vector<8xf32>
    %77 = vector.shape_cast %76 : vector<8xf32> to vector<8x1xf32>
    %78 = arith.fptosi %77 : vector<8x1xf32> to vector<8x1xi32>
    %c0_26 = arith.constant 0 : index
    %c0_27 = arith.constant 0 : index
    %79 = vector.load %arg10[%c0_26, %c0_27] : memref<8x1xi32, #tpu.memory_space<vmem>>, vector<8x1xi32>
    tpu.vector_store %arg10[%c0_26, %c0_27], %78 {strides = array<i32>} : memref<8x1xi32, #tpu.memory_space<vmem>>, vector<8x1xi32>,
    return
  }
  func.func @transform_0(%arg0: i32, %arg1: memref<1xi32, #tpu.memory_space<smem>>) -> (i32, i32) {
    %c0_i32 = arith.constant 0 : i32
    %c0_i32_0 = arith.constant 0 : i32
    return %arg0, %c0_i32 : i32, i32
  }
  func.func @transform_1(%arg0: i32, %arg1: memref<1xi32, #tpu.memory_space<smem>>) -> (i32, i32) {
    %c0_i32 = arith.constant 0 : i32
    %c0_i32_0 = arith.constant 0 : i32
    %c0_i32_1 = arith.constant 0 : i32
    return %c0_i32, %c0_i32_0 : i32, i32
  }
  func.func @transform_2(%arg0: i32, %arg1: memref<1xi32, #tpu.memory_space<smem>>) -> (i32, i32) {
    %c0_i32 = arith.constant 0 : i32
    %c0_i32_0 = arith.constant 0 : i32
    %c0_i32_1 = arith.constant 0 : i32
    return %c0_i32, %c0_i32_0 : i32, i32
  }
  func.func @transform_3(%arg0: i32, %arg1: memref<1xi32, #tpu.memory_space<smem>>) -> (i32, i32) {
    %c0_i32 = arith.constant 0 : i32
    %c0_i32_0 = arith.constant 0 : i32
    %c0_i32_1 = arith.constant 0 : i32
    return %c0_i32, %c0_i32_0 : i32, i32
  }
  func.func @transform_4(%arg0: i32, %arg1: memref<1xi32, #tpu.memory_space<smem>>) -> (i32, i32) {
    %c0_i32 = arith.constant 0 : i32
    %c0_i32_0 = arith.constant 0 : i32
    %c0_i32_1 = arith.constant 0 : i32
    return %c0_i32, %c0_i32_0 : i32, i32
  }
  func.func @transform_5(%arg0: i32, %arg1: memref<1xi32, #tpu.memory_space<smem>>) -> (i32, i32) {
    %c0_i32 = arith.constant 0 : i32
    %c0_i32_0 = arith.constant 0 : i32
    %c0_i32_1 = arith.constant 0 : i32
    return %c0_i32, %c0_i32_0 : i32, i32
  }
  func.func @transform_6(%arg0: i32, %arg1: memref<1xi32, #tpu.memory_space<smem>>) -> (i32, i32) {
    %c0_i32 = arith.constant 0 : i32
    %c0_i32_0 = arith.constant 0 : i32
    %c0_i32_1 = arith.constant 0 : i32
    return %c0_i32, %c0_i32_0 : i32, i32
  }
  func.func @transform_7(%arg0: i32, %arg1: memref<1xi32, #tpu.memory_space<smem>>) -> (i32, i32) {
    %c0_i32 = arith.constant 0 : i32
    %c0_i32_0 = arith.constant 0 : i32
    return %arg0, %c0_i32 : i32, i32
  }
  func.func @transform_8(%arg0: i32, %arg1: memref<1xi32, #tpu.memory_space<smem>>) -> (i32, i32) {
    %c0_i32 = arith.constant 0 : i32
    %c0_i32_0 = arith.constant 0 : i32
    return %arg0, %c0_i32 : i32, i32
  }
}

</mosaic_0001>

<llo_original>
// kernel: tpu_custom_call.1
$region0: #{tpu_custom_call.1}
  #allocation0 [shape = 'u32[]', space=smem, size = 0x4, offset = 0x4, fixed_abs, tag = 'smem constant byte address 0x4 - core index']
  #allocation1 [shape = 'u32[144,128]{1,0:T(1,128)}', space=vmem, size = 0x12000, scoped, tag = 'internal scratch']
  #allocation2 [shape = 's32[1]{0}', space=sflag, size = 0x4, scoped, tag = 'scoped memory for tpu_custom_call.1']
  #allocation3 [shape = 's32[1]{0:T(128)S(6)}', space=smem, size = 0x200, scoped, tag = 'prefetched SMEM operand 0']
  %s0 = inlined_call_operand.<no memory space> [shape: s32[1], index: 0, kind: input, shape index: {}]
  %s1 = inlined_call_operand.hbm [shape: f32[8,16], index: 1, kind: input, shape index: {}]
  %s2 = inlined_call_operand.hbm [shape: f32[16,128], index: 2, kind: input, shape index: {}]
  %s3 = inlined_call_operand.vmem [shape: f32[1,128], index: 3, kind: input, shape index: {}]
  %s4 = inlined_call_operand.hbm [shape: f32[128,128], index: 4, kind: input, shape index: {}]
  %s5 = inlined_call_operand.vmem [shape: f32[1,128], index: 5, kind: input, shape index: {}]
  %s6 = inlined_call_operand.hbm [shape: f32[128,128], index: 6, kind: input, shape index: {}]
  %s7 = inlined_call_operand.vmem [shape: f32[1,128], index: 7, kind: input, shape index: {}]
  %s8 = inlined_call_operand.hbm [shape: f32[8,128], index: 8, kind: output, shape index: {0}]
  %s9 = inlined_call_operand.vmem [shape: s32[8,1], index: 9, kind: output, shape index: {1}]
  %10 = xla_tuple %s8, %s9
  %s11 = sld [smem:[#allocation0]]
  $region62: #{tpu_custom_call.1} parent=0
    _
  %s13 = ssub.s32 1, %s11
  %s14 = scalar_select 0, %s13, %s11
  %15 = sst [smem:[#allocation3]] %s0
  $region1: #{tpu_custom_call.1} parent=0
    #allocation4 [shape = 'u8[4096]{0}', space=vmem, size = 0x1000, scoped, tag = 'input window, operand 1, single buffered']
    #allocation5 [shape = 's32[1]{0}', space=sflag, size = 0x4, scoped, tag = 'scoped memory for tpu_custom_call.1']
    #allocation6 [shape = 's32[1]{0}', space=sflag, size = 0x4, scoped, tag = 'scoped memory for tpu_custom_call.1']
    #allocation7 [shape = 'u8[8192]{0}', space=vmem, size = 0x2000, scoped, tag = 'input window, operand 2, single buffered']
    #allocation8 [shape = 's32[1]{0}', space=sflag, size = 0x4, scoped, tag = 'scoped memory for tpu_custom_call.1']
    #allocation9 [shape = 'u8[65536]{0}', space=vmem, size = 0x10000, scoped, tag = 'input window, operand 4, single buffered']
    #allocation10 [shape = 'u8[65536]{0}', space=vmem, size = 0x10000, scoped, tag = 'input window, operand 6, single buffered']
    #allocation11 [shape = 's32[1]{0}', space=sflag, size = 0x4, scoped, tag = 'scoped memory for tpu_custom_call.1']
    #allocation12 [shape = 'u8[4096]{0}', space=vmem, size = 0x1000, scoped, tag = 'output window, operand 0, single buffered']
    %16 = vsyncpa [#allocation5], 0
    %17 = vsyncpa [#allocation8], 0
    %18 = vsyncpa [#allocation11], 0
    %19 = vsyncpa [#allocation6], 0
    // Predicated region
    $region2: #{tpu_custom_call.1} parent=1 // pred_check
      _
    $region3: #{tpu_custom_call.1} parent=1 // pred_check_branch
      %21 = sbr.rel (0) target = $region5
    $region4: #{tpu_custom_call.1} parent=1 // pred_region
      %s23 = ssub.s32 128, 128
      %24 = vsyncadd [#allocation5], %s23
      %s26 = sshll.u32 [#allocation4], 4
      %s27 = int_to_ptr.vmem [resolvable:$true] %s26
      %29 = dma.hbm_to_vmem [thread:$0]  %s1, 128, %s27, [#allocation5]
    $region5: #{tpu_custom_call.1} parent=1 // pred_fallthru
      _
    // Predicated region
    $region6: #{tpu_custom_call.1} parent=1 // pred_check
      _
    $region7: #{tpu_custom_call.1} parent=1 // pred_check_branch
      %31 = sbr.rel (0) target = $region9
    $region8: #{tpu_custom_call.1} parent=1 // pred_region
      %s33 = ssub.s32 256, 256
      %34 = vsyncadd [#allocation8], %s33
      %s35 = sshll.u32 [#allocation7], 4
      %s36 = int_to_ptr.vmem [resolvable:$true] %s35
      %41 = dma.hbm_to_vmem [thread:$0]  %s2, 256, %s36, [#allocation8], 128, 128, 8
    $region9: #{tpu_custom_call.1} parent=1 // pred_fallthru
      _
    // Predicated region
    $region10: #{tpu_custom_call.1} parent=1 // pred_check
      _
    $region11: #{tpu_custom_call.1} parent=1 // pred_check_branch
      %43 = sbr.rel (0) target = $region13
    $region12: #{tpu_custom_call.1} parent=1 // pred_region
      _
    $region13: #{tpu_custom_call.1} parent=1 // pred_fallthru
      _
    // Predicated region
    $region14: #{tpu_custom_call.1} parent=1 // pred_check
      _
    $region15: #{tpu_custom_call.1} parent=1 // pred_check_branch
      %45 = sbr.rel (0) target = $region17
    $region16: #{tpu_custom_call.1} parent=1 // pred_region
      %s47 = ssub.s32 2048, 2048
      %48 = vsyncadd [#allocation8], %s47
      %s49 = sshll.u32 [#allocation9], 4
      %s50 = int_to_ptr.vmem [resolvable:$true] %s49
      %55 = dma.hbm_to_vmem [thread:$0]  %s4, 2048, %s50, [#allocation8], 128, 128, 8
    $region17: #{tpu_custom_call.1} parent=1 // pred_fallthru
      _
    // Predicated region
    $region18: #{tpu_custom_call.1} parent=1 // pred_check
      _
    $region19: #{tpu_custom_call.1} parent=1 // pred_check_branch
      %57 = sbr.rel (0) target = $region21
    $region20: #{tpu_custom_call.1} parent=1 // pred_region
      _
    $region21: #{tpu_custom_call.1} parent=1 // pred_fallthru
      _
    // Predicated region
    $region22: #{tpu_custom_call.1} parent=1 // pred_check
      _
    $region23: #{tpu_custom_call.1} parent=1 // pred_check_branch
      %59 = sbr.rel (0) target = $region25
    $region24: #{tpu_custom_call.1} parent=1 // pred_region
      %s61 = ssub.s32 2048, 2048
      %62 = vsyncadd [#allocation11], %s61
      %s63 = sshll.u32 [#allocation10], 4
      %s64 = int_to_ptr.vmem [resolvable:$true] %s63
      %69 = dma.hbm_to_vmem [thread:$0]  %s6, 2048, %s64, [#allocation11], 128, 128, 8
    $region25: #{tpu_custom_call.1} parent=1 // pred_fallthru
      _
    // Predicated region
    $region26: #{tpu_custom_call.1} parent=1 // pred_check
      _
    $region27: #{tpu_custom_call.1} parent=1 // pred_check_branch
      %71 = sbr.rel (0) target = $region29
    $region28: #{tpu_custom_call.1} parent=1 // pred_region
      _
    $region29: #{tpu_custom_call.1} parent=1 // pred_fallthru
      _
    // Predicated region
    $region30: #{tpu_custom_call.1} parent=1 // pred_check
      _
    $region31: #{tpu_custom_call.1} parent=1 // pred_check_branch
      %73 = sbr.rel (0) target = $region33
    $region32: #{tpu_custom_call.1} parent=1 // pred_region
      %74 = dma.done [#allocation5], 128
    $region33: #{tpu_custom_call.1} parent=1 // pred_fallthru
      _
    // Predicated region
    $region34: #{tpu_custom_call.1} parent=1 // pred_check
      _
    $region35: #{tpu_custom_call.1} parent=1 // pred_check_branch
      %76 = sbr.rel (0) target = $region37
    $region36: #{tpu_custom_call.1} parent=1 // pred_region
      %77 = dma.done [#allocation8], 256
    $region37: #{tpu_custom_call.1} parent=1 // pred_fallthru
      _
    // Predicated region
    $region38: #{tpu_custom_call.1} parent=1 // pred_check
      _
    $region39: #{tpu_custom_call.1} parent=1 // pred_check_branch
      %79 = sbr.rel (0) target = $region41
    $region40: #{tpu_custom_call.1} parent=1 // pred_region
      %80 = dma.done [#allocation8], 2048
    $region41: #{tpu_custom_call.1} parent=1 // pred_fallthru
      _
    // Predicated region
    $region42: #{tpu_custom_call.1} parent=1 // pred_check
      _
    $region43: #{tpu_custom_call.1} parent=1 // pred_check_branch
      %82 = sbr.rel (0) target = $region45
    $region44: #{tpu_custom_call.1} parent=1 // pred_region
      %83 = dma.done [#allocation11], 2048
    $region45: #{tpu_custom_call.1} parent=1 // pred_fallthru
      _
    %v84 = vld [vmem:[#allocation4] sm:$0xff]
    %v85 = vld [vmem:[#allocation7] sm:$0xff]
    %v86 = vld [vmem:[#allocation7 + $0x8] sm:$0xff]
    %v87 = vld [vmem:[%s3] sm:$0x1]
    %v89 = vlaneseq
    %v90 = vshrl.u32 %v89, 7
    %v91 = vsub.s32 0, %v90
    %v92 = vrot.slane %v87, %v91
    %vm94 = vcmask 130048
    %v96 = vsel %vm94, %v84, 0
    %98 = vmatprep.subr.mxu0 0.0
    %99 = vmatpush1.msra.mxu0 0.0
    %100 = vmatprep.subr.mxu0 0.0
    %101 = vmatpush1.msra.mxu0 0.0
    %102 = vmatprep.subr.mxu0 0.0
    %103 = vmatpush1.msra.mxu0 0.0
    %104 = vmatprep.subr.mxu0 0.0
    %105 = vmatpush1.msra.mxu0 0.0
    %106 = vmatprep.subr.mxu0 0.0
    %107 = vmatpush1.msra.mxu0 0.0
    %108 = vmatprep.subr.mxu0 0.0
    %109 = vmatpush1.msra.mxu0 0.0
    %110 = vmatprep.subr.mxu0 0.0
    %111 = vmatpush1.msra.mxu0 0.0
    %112 = vmatprep.subr.mxu0 0.0
    %113 = vmatpush1.msra.mxu0 0.0
    %114 = vmatprep.subr.mxu0 0.0
    %115 = vmatpush1.msra.mxu0 0.0
    %116 = vmatprep.subr.mxu0 0.0
    %117 = vmatpush1.msra.mxu0 0.0
    %118 = vmatprep.subr.mxu0 0.0
    %119 = vmatpush1.msra.mxu0 0.0
    %120 = vmatprep.subr.mxu0 0.0
    %121 = vmatpush1.msra.mxu0 0.0
    %122 = vmatprep.subr.mxu0 0.0
    %123 = vmatpush1.msra.mxu0 0.0
    %124 = vmatprep.subr.mxu0 0.0
    %125 = vmatpush1.msra.mxu0 0.0
    %126 = vmatprep.subr.mxu0 0.0
    %127 = vmatpush1.msra.mxu0 %v86
    %128 = vmatprep.subr.mxu0 0.0
    %129 = vmatpush1.msra.mxu0 %v85
    %130 = vmatprep.subr.mxu0 0.0
    %131 = vmatpush2.msra.mxu0 0.0
    %132 = vmatprep.subr.mxu0 0.0
    %133 = vmatpush2.msra.mxu0 0.0
    %134 = vmatprep.subr.mxu0 0.0
    %135 = vmatpush2.msra.mxu0 0.0
    %136 = vmatprep.subr.mxu0 0.0
    %137 = vmatpush2.msra.mxu0 0.0
    %138 = vmatprep.subr.mxu0 0.0
    %139 = vmatpush2.msra.mxu0 0.0
    %140 = vmatprep.subr.mxu0 0.0
    %141 = vmatpush2.msra.mxu0 0.0
    %142 = vmatprep.subr.mxu0 0.0
    %143 = vmatpush2.msra.mxu0 0.0
    %144 = vmatprep.subr.mxu0 0.0
    %145 = vmatpush2.msra.mxu0 0.0
    %146 = vmatprep.subr.mxu0 0.0
    %147 = vmatpush2.msra.mxu0 0.0
    %148 = vmatprep.subr.mxu0 0.0
    %149 = vmatpush2.msra.mxu0 0.0
    %150 = vmatprep.subr.mxu0 0.0
    %151 = vmatpush2.msra.mxu0 0.0
    %152 = vmatprep.subr.mxu0 0.0
    %153 = vmatpush2.msra.mxu0 0.0
    %154 = vmatprep.subr.mxu0 0.0
    %155 = vmatpush2.msra.mxu0 0.0
    %156 = vmatprep.subr.mxu0 0.0
    %157 = vmatpush2.msra.mxu0 0.0
    %158 = vmatprep.subr.mxu0 0.0
    %159 = vmatpush2.msra.mxu0 0.0
    %160 = vmatprep.subr.mxu0 0.0
    %161 = vmatpush2.msra.mxu0 0.0
    %162 = vmatprep.mubr.f32.mxu0 0.0
    %163 = vmatmul.mubr.f32.gmra.mxu0 %v96
    %v164 = vpop.f32.mrf.mxu0
    %v165 = vadd.f32 %v92, %v164
    %v166 = vpop.f32.mrf.mxu0
    %167 = vdwg.mxu0
    %v168 = vtanh.pop %v165
    %v169 = vld [vmem:[#allocation9] sm:$0xff]
    %v170 = vld [vmem:[#allocation9 + $0x8] sm:$0xff]
    %v171 = vld [vmem:[#allocation9 + $0x10] sm:$0xff]
    %v172 = vld [vmem:[#allocation9 + $0x18] sm:$0xff]
    %v173 = vld [vmem:[#allocation9 + $0x20] sm:$0xff]
    %v174 = vld [vmem:[#allocation9 + $0x28] sm:$0xff]
    %v175 = vld [vmem:[#allocation9 + $0x30] sm:$0xff]
    %v176 = vld [vmem:[#allocation9 + $0x38] sm:$0xff]
    %v177 = vld [vmem:[#allocation9 + $0x40] sm:$0xff]
    %v178 = vld [vmem:[#allocation9 + $0x48] sm:$0xff]
    %v179 = vld [vmem:[#allocation9 + $0x50] sm:$0xff]
    %v180 = vld [vmem:[#allocation9 + $0x58] sm:$0xff]
    %v181 = vld [vmem:[#allocation9 + $0x60] sm:$0xff]
    %v182 = vld [vmem:[#allocation9 + $0x68] sm:$0xff]
    %v183 = vld [vmem:[#allocation9 + $0x70] sm:$0xff]
    %v184 = vld [vmem:[#allocation9 + $0x78] sm:$0xff]
    %v185 = vld [vmem:[%s5] sm:$0x1]
    %v187 = vlaneseq
    %v188 = vshrl.u32 %v187, 7
    %v189 = vsub.s32 0, %v188
    %v190 = vrot.slane %v185, %v189
    %192 = vmatprep.subr.mxu0 0.0
    %193 = vmatpush1.msra.mxu0 %v184
    %194 = vmatprep.subr.mxu0 0.0
    %195 = vmatpush1.msra.mxu0 %v183
    %196 = vmatprep.subr.mxu0 0.0
    %197 = vmatpush1.msra.mxu0 %v182
    %198 = vmatprep.subr.mxu0 0.0
    %199 = vmatpush1.msra.mxu0 %v181
    %200 = vmatprep.subr.mxu0 0.0
    %201 = vmatpush1.msra.mxu0 %v180
    %202 = vmatprep.subr.mxu0 0.0
    %203 = vmatpush1.msra.mxu0 %v179
    %204 = vmatprep.subr.mxu0 0.0
    %205 = vmatpush1.msra.mxu0 %v178
    %206 = vmatprep.subr.mxu0 0.0
    %207 = vmatpush1.msra.mxu0 %v177
    %208 = vmatprep.subr.mxu0 0.0
    %209 = vmatpush1.msra.mxu0 %v176
    %210 = vmatprep.subr.mxu0 0.0
    %211 = vmatpush1.msra.mxu0 %v175
    %212 = vmatprep.subr.mxu0 0.0
    %213 = vmatpush1.msra.mxu0 %v174
    %214 = vmatprep.subr.mxu0 0.0
    %215 = vmatpush1.msra.mxu0 %v173
    %216 = vmatprep.subr.mxu0 0.0
    %217 = vmatpush1.msra.mxu0 %v172
    %218 = vmatprep.subr.mxu0 0.0
    %219 = vmatpush1.msra.mxu0 %v171
    %220 = vmatprep.subr.mxu0 0.0
    %221 = vmatpush1.msra.mxu0 %v170
    %222 = vmatprep.subr.mxu0 0.0
    %223 = vmatpush1.msra.mxu0 %v169
    %224 = vmatprep.subr.mxu0 0.0
    %225 = vmatpush2.msra.mxu0 0.0
    %226 = vmatprep.subr.mxu0 0.0
    %227 = vmatpush2.msra.mxu0 0.0
    %228 = vmatprep.subr.mxu0 0.0
    %229 = vmatpush2.msra.mxu0 0.0
    %230 = vmatprep.subr.mxu0 0.0
    %231 = vmatpush2.msra.mxu0 0.0
    %232 = vmatprep.subr.mxu0 0.0
    %233 = vmatpush2.msra.mxu0 0.0
    %234 = vmatprep.subr.mxu0 0.0
    %235 = vmatpush2.msra.mxu0 0.0
    %236 = vmatprep.subr.mxu0 0.0
    %237 = vmatpush2.msra.mxu0 0.0
    %238 = vmatprep.subr.mxu0 0.0
    %239 = vmatpush2.msra.mxu0 0.0
    %240 = vmatprep.subr.mxu0 0.0
    %241 = vmatpush2.msra.mxu0 0.0
    %242 = vmatprep.subr.mxu0 0.0
    %243 = vmatpush2.msra.mxu0 0.0
    %244 = vmatprep.subr.mxu0 0.0
    %245 = vmatpush2.msra.mxu0 0.0
    %246 = vmatprep.subr.mxu0 0.0
    %247 = vmatpush2.msra.mxu0 0.0
    %248 = vmatprep.subr.mxu0 0.0
    %249 = vmatpush2.msra.mxu0 0.0
    %250 = vmatprep.subr.mxu0 0.0
    %251 = vmatpush2.msra.mxu0 0.0
    %252 = vmatprep.subr.mxu0 0.0
    %253 = vmatpush2.msra.mxu0 0.0
    %254 = vmatprep.subr.mxu0 0.0
    %255 = vmatpush2.msra.mxu0 0.0
    %256 = vmatprep.mubr.f32.mxu0 0.0
    %257 = vmatmul.mubr.f32.gmra.mxu0 %v168
    %v258 = vpop.f32.mrf.mxu0
    %v259 = vadd.f32 %v190, %v258
    %v260 = vpop.f32.mrf.mxu0
    %261 = vdwg.mxu0
    %v262 = vtanh.pop %v259
    %v263 = vld [vmem:[#allocation10] sm:$0xff]
    %v264 = vld [vmem:[#allocation10 + $0x8] sm:$0xff]
    %v265 = vld [vmem:[#allocation10 + $0x10] sm:$0xff]
    %v266 = vld [vmem:[#allocation10 + $0x18] sm:$0xff]
    %v267 = vld [vmem:[#allocation10 + $0x20] sm:$0xff]
    %v268 = vld [vmem:[#allocation10 + $0x28] sm:$0xff]
    %v269 = vld [vmem:[#allocation10 + $0x30] sm:$0xff]
    %v270 = vld [vmem:[#allocation10 + $0x38] sm:$0xff]
    %v271 = vld [vmem:[#allocation10 + $0x40] sm:$0xff]
    %v272 = vld [vmem:[#allocation10 + $0x48] sm:$0xff]
    %v273 = vld [vmem:[#allocation10 + $0x50] sm:$0xff]
    %v274 = vld [vmem:[#allocation10 + $0x58] sm:$0xff]
    %v275 = vld [vmem:[#allocation10 + $0x60] sm:$0xff]
    %v276 = vld [vmem:[#allocation10 + $0x68] sm:$0xff]
    %v277 = vld [vmem:[#allocation10 + $0x70] sm:$0xff]
    %v278 = vld [vmem:[#allocation10 + $0x78] sm:$0xff]
    %v279 = vld [vmem:[%s7] sm:$0x1]
    %v281 = vlaneseq
    %v282 = vshrl.u32 %v281, 7
    %v283 = vsub.s32 0, %v282
    %v284 = vrot.slane %v279, %v283
    %286 = vmatprep.subr.mxu0 0.0
    %287 = vmatpush1.msra.mxu0 %v278
    %288 = vmatprep.subr.mxu0 0.0
    %289 = vmatpush1.msra.mxu0 %v277
    %290 = vmatprep.subr.mxu0 0.0
    %291 = vmatpush1.msra.mxu0 %v276
    %292 = vmatprep.subr.mxu0 0.0
    %293 = vmatpush1.msra.mxu0 %v275
    %294 = vmatprep.subr.mxu0 0.0
    %295 = vmatpush1.msra.mxu0 %v274
    %296 = vmatprep.subr.mxu0 0.0
    %297 = vmatpush1.msra.mxu0 %v273
    %298 = vmatprep.subr.mxu0 0.0
    %299 = vmatpush1.msra.mxu0 %v272
    %300 = vmatprep.subr.mxu0 0.0
    %301 = vmatpush1.msra.mxu0 %v271
    %302 = vmatprep.subr.mxu0 0.0
    %303 = vmatpush1.msra.mxu0 %v270
    %304 = vmatprep.subr.mxu0 0.0
    %305 = vmatpush1.msra.mxu0 %v269
    %306 = vmatprep.subr.mxu0 0.0
    %307 = vmatpush1.msra.mxu0 %v268
    %308 = vmatprep.subr.mxu0 0.0
    %309 = vmatpush1.msra.mxu0 %v267
    %310 = vmatprep.subr.mxu0 0.0
    %311 = vmatpush1.msra.mxu0 %v266
    %312 = vmatprep.subr.mxu0 0.0
    %313 = vmatpush1.msra.mxu0 %v265
    %314 = vmatprep.subr.mxu0 0.0
    %315 = vmatpush1.msra.mxu0 %v264
    %316 = vmatprep.subr.mxu0 0.0
    %317 = vmatpush1.msra.mxu0 %v263
    %318 = vmatprep.subr.mxu0 0.0
    %319 = vmatpush2.msra.mxu0 0.0
    %320 = vmatprep.subr.mxu0 0.0
    %321 = vmatpush2.msra.mxu0 0.0
    %322 = vmatprep.subr.mxu0 0.0
    %323 = vmatpush2.msra.mxu0 0.0
    %324 = vmatprep.subr.mxu0 0.0
    %325 = vmatpush2.msra.mxu0 0.0
    %326 = vmatprep.subr.mxu0 0.0
    %327 = vmatpush2.msra.mxu0 0.0
    %328 = vmatprep.subr.mxu0 0.0
    %329 = vmatpush2.msra.mxu0 0.0
    %330 = vmatprep.subr.mxu0 0.0
    %331 = vmatpush2.msra.mxu0 0.0
    %332 = vmatprep.subr.mxu0 0.0
    %333 = vmatpush2.msra.mxu0 0.0
    %334 = vmatprep.subr.mxu0 0.0
    %335 = vmatpush2.msra.mxu0 0.0
    %336 = vmatprep.subr.mxu0 0.0
    %337 = vmatpush2.msra.mxu0 0.0
    %338 = vmatprep.subr.mxu0 0.0
    %339 = vmatpush2.msra.mxu0 0.0
    %340 = vmatprep.subr.mxu0 0.0
    %341 = vmatpush2.msra.mxu0 0.0
    %342 = vmatprep.subr.mxu0 0.0
    %343 = vmatpush2.msra.mxu0 0.0
    %344 = vmatprep.subr.mxu0 0.0
    %345 = vmatpush2.msra.mxu0 0.0
    %346 = vmatprep.subr.mxu0 0.0
    %347 = vmatpush2.msra.mxu0 0.0
    %348 = vmatprep.subr.mxu0 0.0
    %349 = vmatpush2.msra.mxu0 0.0
    %350 = vmatprep.mubr.f32.mxu0 0.0
    %351 = vmatmul.mubr.f32.gmra.mxu0 %v262
    %v352 = vpop.f32.mrf.mxu0
    %v353 = vadd.f32 %v284, %v352
    %v354 = vpop.f32.mrf.mxu0
    %355 = vdwg.mxu0
    %356 = vmax.xlane.f32.xlu0 %v353
    %v357 = vpop.xlane.xlu0 %356
    %v358 = vsub.f32 %v353, %v357
    %v359 = vmul.f32 %v358, 1.442695
    %v360 = vpow.pop %v359
    %361 = vadd.xlane.f32.xlu0 %v360
    %v362 = vpop.xlane.xlu0 %361
    %v363 = vlog2.pop %v362
    %v364 = vmul.f32 %v363, 0.6931472
    %v365 = vsub.f32 %v358, %v364
    %366 = vst [vmem:[#allocation12] sm:$0xff] %v365
    %s367 = sld [smem:[#allocation3]]
    %s368 = smul.u32 %s367, 2654435761
    %s369 = smul.u32 0, 2246822519
    %s370 = sadd.s32 %s368, %s369
    %v371 = vlaneseq
    %v372 = vshrl.u32 %v371, 7
    %v373 = vlaneseq
    %v374 = vand.u32 %v373, 127
    %v375 = vmul.u32 %v372, 668265263
    %v376 = vstv %s370
    %v377 = vadd.s32 %v376, %v375
    %v378 = vmul.u32 %v374, 374761393
    %v379 = vadd.s32 %v377, %v378
    %v380 = vshrl.u32 %v379, 16
    %v381 = vxor.u32 %v379, %v380
    %v382 = vmul.u32 %v381, 2146121005
    %v383 = vshrl.u32 %v382, 15
    %v384 = vxor.u32 %v382, %v383
    %v385 = vmul.u32 %v384, 2221713035
    %v386 = vshrl.u32 %v385, 16
    %v387 = vxor.u32 %v385, %v386
    %v388 = vshrl.u32 %v387, 9
    %v389 = vor.u32 %v388, 1065353216
    %v391 = vsub.f32 %v389, 1.0
    %v392 = vlog2.pop %v391
    %v393 = vmul.f32 %v392, 0.6931472
    %v394 = vsub.f32 0.0, %v393
    %v395 = vrcp.pop %v394
    %v396 = vmul.f32 %v360, %v395
    %397 = vmax.xlane.f32.xlu0 %v396
    %v398 = vpop.xlane.xlu0 %397
    %v399 = vcvt.s32.f32 %v374
    %vm400 = vcmp.ge.f32.partialorder %v396, %v398
    %v401 = vsel %vm400, %v399, 128.0
    %402 = vmin.xlane.f32.xlu0 %v401
    %v403 = vpop.xlane.xlu0 %402
    %v404 = vcvt.f32.s32.to.zero.pseudo %v403
    %vm405 = vcmask 7168
    %406 = vst.msk [vmem:[%s9] sm:$0xff] %vm405, %v404
    // Predicated region
    $region46: #{tpu_custom_call.1} parent=1 // pred_check
      _
    $region47: #{tpu_custom_call.1} parent=1 // pred_check_branch
      %408 = sbr.rel (0) target = $region49
    $region48: #{tpu_custom_call.1} parent=1 // pred_region
      %s410 = ssub.s32 128, 128
      %411 = vsyncadd [#allocation6], %s410
      %s413 = sshll.u32 [#allocation12], 4
      %s414 = int_to_ptr.vmem [resolvable:$true] %s413
      %416 = dma.vmem_to_hbm [thread:$0]  %s414, 128, %s8, [#allocation6]
    $region49: #{tpu_custom_call.1} parent=1 // pred_fallthru
      _
    // Predicated region
    $region50: #{tpu_custom_call.1} parent=1 // pred_check
      _
    $region51: #{tpu_custom_call.1} parent=1 // pred_check_branch
      %418 = sbr.rel (0) target = $region53
    $region52: #{tpu_custom_call.1} parent=1 // pred_region
      _
    $region53: #{tpu_custom_call.1} parent=1 // pred_fallthru
      _
    // Predicated region
    $region54: #{tpu_custom_call.1} parent=1 // pred_check
      _
    $region55: #{tpu_custom_call.1} parent=1 // pred_check_branch
      %420 = sbr.rel (0) target = $region57
    $region56: #{tpu_custom_call.1} parent=1 // pred_region
      %421 = dma.done [#allocation6], 128
    $region57: #{tpu_custom_call.1} parent=1 // pred_fallthru
      _
    // Predicated region
    $region58: #{tpu_custom_call.1} parent=1 // pred_check
      _
    $region59: #{tpu_custom_call.1} parent=1 // pred_check_branch
      %423 = sbr.rel (0) target = $region61
    $region60: #{tpu_custom_call.1} parent=1 // pred_region
      _
    $region61: #{tpu_custom_call.1} parent=1 // pred_fallthru
      _
    %424 = vsyncpa [#allocation5], 1
    %425 = vsyncpa [#allocation8], 1
    %426 = vsyncpa [#allocation11], 1
    %427 = vsyncpa [#allocation6], 1

</llo_original>
